<compile_context>
chip_gen: v5e
topology: v5e:2x2
jax: 0.10.0
libtpu: 0.0.40
codegen_flags: <defaults>
</compile_context>

<pallas_src>
import jax
import jax.numpy as jnp
from jax.experimental import pallas as pl
from jax.experimental.pallas import tpu as pltpu

PAD_IDX, SOS_IDX, EOS_IDX, UNK_IDX = 0, 1, 2, 3
NUM_LAYERS = 2  # fixed by the module default


def _round_up(x, m):
    return ((x + m - 1) // m) * m


def _pick_tile(n, candidates):
    for c in candidates:
        if n % c == 0:
            return c
    return n


# --------------------------------------------------------------------------
# Generic tiled GEMM + bias (used for the hoisted gate GEMM and the vocab
# projection).  K-in-one-tile fast path skips the accumulator scratch.
# --------------------------------------------------------------------------
def _mm_bias_k1_kernel(a_ref, b_ref, bias_ref, o_ref):
    o_ref[...] = (jnp.dot(a_ref[...], b_ref[...],
                          preferred_element_type=jnp.float32)
                  + bias_ref[...]).astype(o_ref.dtype)


def _mm_bias_acc_kernel(a_ref, b_ref, bias_ref, o_ref, acc_ref):
    @pl.when(pl.program_id(2) == 0)
    def _():
        acc_ref[...] = jnp.zeros_like(acc_ref)

    acc_ref[...] += jnp.dot(a_ref[...], b_ref[...],
                            preferred_element_type=jnp.float32)

    @pl.when(pl.program_id(2) == pl.num_programs(2) - 1)
    def _():
        o_ref[...] = (acc_ref[...] + bias_ref[...]).astype(o_ref.dtype)


def tiled_matmul_bias(a, b, bias, *, out_dtype, tm, tn, tk):
    M, K = a.shape
    _, N = b.shape
    kg = K // tk
    if kg == 1:
        # No accumulator revisit when K fits one tile: write dot + bias directly.
        kernel = _mm_bias_k1_kernel
        grid = (M // tm, N // tn)
        in_specs = [pl.BlockSpec((tm, K), lambda i, j: (i, 0)),
                    pl.BlockSpec((K, tn), lambda i, j: (0, j)),
                    pl.BlockSpec((1, tn), lambda i, j: (0, j))]
        out_specs = pl.BlockSpec((tm, tn), lambda i, j: (i, j))
        scratch = []
        dims = ("parallel", "parallel")
    else:
        kernel = _mm_bias_acc_kernel
        grid = (M // tm, N // tn, kg)
        in_specs = [pl.BlockSpec((tm, tk), lambda i, j, k: (i, k)),
                    pl.BlockSpec((tk, tn), lambda i, j, k: (k, j)),
                    pl.BlockSpec((1, tn), lambda i, j, k: (0, j))]
        out_specs = pl.BlockSpec((tm, tn), lambda i, j, k: (i, j))
        scratch = [pltpu.VMEM((tm, tn), jnp.float32)]
        dims = ("parallel", "parallel", "arbitrary")

    return pl.pallas_call(
        kernel,
        out_shape=jax.ShapeDtypeStruct((M, N), out_dtype),
        grid_spec=pltpu.PrefetchScalarGridSpec(
            num_scalar_prefetch=0, grid=grid,
            in_specs=in_specs, out_specs=out_specs, scratch_shapes=scratch),
        compiler_params=pltpu.CompilerParams(
            dimension_semantics=dims,
            vmem_limit_bytes=32 * 1024 * 1024),
    )(a, b, bias)


# --------------------------------------------------------------------------
# Kernel A: 2-layer LSTM recurrence over T-chunks (grid = (batch_blk, t_chunk)).
# Gate-input GEMM is precomputed (kernel G); only the recurrent matmuls remain
# on the serial path.  h/c carried in VMEM scratch across t-chunks.
# --------------------------------------------------------------------------
def lstm_recurrence_kernel(gin_ref, mask_ref, z_ref, wlin_ref, blin_ref,
                           whh0_ref, wih1_ref, whh1_ref, b1_ref,
                           h_out_ref, h0_s, c0_s, h1_s, c1_s):
    """gin_ref:(Tc,Bblk,4Hp) bf16  mask_ref:(Tc,Bblk,1) bf16  z_ref:(Bblk,Lzp) bf16
       wlin_ref:(Lzp,Hp) bf16  blin_ref:(1,Hp) f32
       whh0/wih1/whh1:(Hp,4Hp) bf16  b1_ref:(1,4Hp) f32
       h_out_ref:(Tc,Bblk,Hp) bf16   h?_s/c?_s:(Bblk,Hp) f32 scratch (carried)."""
    Tc = gin_ref.shape[0]
    Bblk, Hp = h0_s.shape

    # _transform_hidden: h0 = c0 = Linear(large_z), replicated over both layers.
    @pl.when(pl.program_id(1) == 0)
    def _():
        h_init = (jnp.dot(z_ref[...], wlin_ref[...],
                          preferred_element_type=jnp.float32) + blin_ref[...])
        h0_s[...] = h_init
        c0_s[...] = h_init
        h1_s[...] = h_init
        c1_s[...] = h_init

    whh0 = whh0_ref[...]
    wih1 = wih1_ref[...]
    whh1 = whh1_ref[...]
    # hoist the bias broadcast out of the loop (JAX does not CSE broadcast_in_dim)
    b1_full = jnp.broadcast_to(b1_ref[...], (Bblk, 4 * Hp))

    def gates_to_hc(gates, c):
        # PyTorch LSTM gate order: [i, f, g, o]; elementwise math in f32.
        i = jax.nn.sigmoid(gates[:, 0 * Hp:1 * Hp])
        f = jax.nn.sigmoid(gates[:, 1 * Hp:2 * Hp])
        g = jnp.tanh(gates[:, 2 * Hp:3 * Hp])
        o = jax.nn.sigmoid(gates[:, 3 * Hp:4 * Hp])
        c_new = f * c + i * g
        h_new = o * jnp.tanh(c_new)
        return h_new, c_new

    def body(t, carry):
        h0, c0, h1, c1 = carry
        # layer 0: only the recurrent matmul is on the serial path
        g0 = gin_ref[t].astype(jnp.float32) + jnp.dot(
            h0.astype(jnp.bfloat16), whh0, preferred_element_type=jnp.float32)
        h0, c0 = gates_to_hc(g0, c0)
        # layer 1: two dots accumulated (no per-step concat copy)
        g1 = (jnp.dot(h0.astype(jnp.bfloat16), wih1,
                      preferred_element_type=jnp.float32)
              + jnp.dot(h1.astype(jnp.bfloat16), whh1,
                        preferred_element_type=jnp.float32)
              + b1_full)
        h1, c1 = gates_to_hc(g1, c1)
        h_out_ref[t] = h1.astype(h_out_ref.dtype)
        return (h0, c0, h1, c1)

    # unroll=4 gives the scheduler visibility to overlap step t+1's layer-0 MXU
    # pushes with step t's layer-1 EUP/VPU gate math (latency-bound regime).
    h0, c0, h1, c1 = jax.lax.fori_loop(
        0, Tc, body, (h0_s[...], c0_s[...], h1_s[...], c1_s[...]), unroll=4)
    h0_s[...] = h0
    c0_s[...] = c0
    h1_s[...] = h1
    c1_s[...] = c1

    # pack/pad_packed semantics: zero hidden outputs past each sequence length,
    # applied once per chunk, in bf16 (mask values are exactly 0/1).
    h_out_ref[...] = h_out_ref[...] * mask_ref[...]


# --------------------------------------------------------------------------
# One-time weight preparation (per-gate-block padding keeps gate slices lane
# aligned and padded hidden channels exactly zero through the recurrence).
# Hoisted out of the forward pass so weights are not re-padded per call.
# --------------------------------------------------------------------------
def _pad_gate_weight(w, H, Hp, in_dim, in_dim_p):
    # w: (4H, in_dim) PyTorch layout -> (in_dim_p, 4*Hp), zero padded per gate.
    w4 = w.reshape(4, H, in_dim)
    w4 = jnp.pad(w4, ((0, 0), (0, Hp - H), (0, in_dim_p - in_dim)))
    return jnp.transpose(w4.reshape(4 * Hp, in_dim_p), (1, 0))


def _pad_gate_bias(b, H, Hp):
    b4 = jnp.pad(b.reshape(4, H), ((0, 0), (0, Hp - H)))
    return b4.reshape(1, 4 * Hp).astype(jnp.float32)


def prepare_decoder_params(params, enc_hidden_dim):
    emb_dim = params["emb"].shape[1]
    H = params["lin_w"].shape[0]
    latent = params["lin_w"].shape[1]
    V = params["out_w"].shape[0]
    Din = emb_dim + enc_hidden_dim
    Dinp = _round_up(Din, 128)
    Hp = _round_up(H, 128)
    Lzp = _round_up(latent, 128)
    Vp = _round_up(V, 128)

    prepped = {
        "emb": params["emb"],
        "wlin": jnp.pad(params["lin_w"], ((0, Hp - H), (0, Lzp - latent))
                        ).T.astype(jnp.bfloat16),                   # (Lzp, Hp)
        "blin": jnp.pad(params["lin_b"], (0, Hp - H))[None, :].astype(jnp.float32),
        "wih0": _pad_gate_weight(params["w_ih_l0"], H, Hp, Din, Dinp
                                 ).astype(jnp.bfloat16),             # (Dinp, 4Hp)
        "whh0": _pad_gate_weight(params["w_hh_l0"], H, Hp, H, Hp
                                 ).astype(jnp.bfloat16),             # (Hp, 4Hp)
        "b0": _pad_gate_bias(params["b_ih_l0"] + params["b_hh_l0"], H, Hp),
        "wih1": _pad_gate_weight(params["w_ih_l1"], H, Hp, H, Hp
                                 ).astype(jnp.bfloat16),
        "whh1": _pad_gate_weight(params["w_hh_l1"], H, Hp, H, Hp
                                 ).astype(jnp.bfloat16),
        "b1": _pad_gate_bias(params["b_ih_l1"] + params["b_hh_l1"], H, Hp),
        "wout": jnp.pad(params["out_w"], ((0, Vp - V), (0, Hp - H))
                        ).T.astype(jnp.bfloat16),                    # (Hp, Vp)
        "bout": jnp.pad(params["out_b"], (0, Vp - V))[None, :].astype(jnp.float32),
        "dims": dict(emb_dim=emb_dim, enc_hidden=enc_hidden_dim, H=H, V=V,
                     latent=latent, Din=Din, Dinp=Dinp, Hp=Hp, Lzp=Lzp, Vp=Vp),
    }
    return jax.block_until_ready(prepped)


# --------------------------------------------------------------------------
# Forward wrapper (matches Decoder.forward semantics)
# --------------------------------------------------------------------------
def decoder_forward(prepped, y, large_z, context, word_drop_p=0.1,
                    drop_key=None, num_batch_blocks=1):
    """y: (B, T) int32 tokens; large_z: (B, 1, latent); context: (B, 1, enc_hidden).
       num_batch_blocks: set 2 on v7x when padded batch >= 16 to shard the
       recurrence across both TensorCores (leave 1 on v5e/v6e)."""
    d = prepped["dims"]
    B, T = y.shape
    Din, Dinp, Hp, Lzp, Vp = d["Din"], d["Dinp"], d["Hp"], d["Lzp"], d["Vp"]

    # TODO(synk): `truncate`, `append` and `word_drop` are external helpers not
    # defined in the module; standard sentence-VAE semantics are reimplemented.
    y_trunc = y[:, :-1]                                          # truncate(y, 'eos')
    y_in = jnp.concatenate(                                      # append(..., 'sos')
        [jnp.full((B, 1), SOS_IDX, jnp.int32), y_trunc], axis=1)
    lengths = jnp.sum((y != PAD_IDX).astype(jnp.int32), axis=1)

    if word_drop_p > 0.0 and drop_key is not None:
        keep = jax.random.uniform(drop_key, y_in.shape) >= word_drop_p
        y_in = jnp.where(keep, y_in, UNK_IDX)

    emb = prepped["emb"][y_in]                                   # (B, T, 300)
    ctx = jnp.broadcast_to(context, (B, T, d["enc_hidden"]))     # context.repeat
    x = jnp.concatenate([emb, ctx], axis=-1)                     # (B, T, Din)

    Bp = _round_up(max(B, 8), 8)

    # time-major, padded, bf16 LSTM input (row index = t*Bp + b)
    x_tm = jnp.transpose(x, (1, 0, 2))
    x_tm = jnp.pad(x_tm, ((0, 0), (0, Bp - B),
                          (0, Dinp - Din))).astype(jnp.bfloat16)
    x_flat = x_tm.reshape(T * Bp, Dinp)

    lengths_p = jnp.pad(lengths, (0, Bp - B))                    # padded rows: len 0
    mask = (jnp.arange(T)[:, None] < lengths_p[None, :]
            ).astype(jnp.bfloat16)[:, :, None]                   # (T, Bp, 1)

    z = jnp.reshape(large_z, (B, d["latent"]))
    z = jnp.pad(z, ((0, Bp - B), (0, Lzp - d["latent"]))).astype(jnp.bfloat16)

    # ---- kernel G: hoisted input-side gate GEMM (bias b0 folded in), bf16 out ----
    M_gin = T * Bp
    gin = tiled_matmul_bias(
        x_flat, prepped["wih0"], prepped["b0"], out_dtype=jnp.bfloat16,
        tm=_pick_tile(M_gin, (512, 256, 128, 64, 32, 16, 8)),
        tn=_pick_tile(4 * Hp, (512, 256, 128)),
        tk=_pick_tile(Dinp, (512, 256, 128)))
    gin = gin.reshape(T, Bp, 4 * Hp)

    # ---- kernel A: chunked, pipelined LSTM recurrence -> (T, Bp, Hp) bf16 ----
    num_bb = num_batch_blocks
    if Bp % num_bb != 0 or (Bp // num_bb) % 8 != 0:
        num_bb = 1
    Bblk = Bp // num_bb
    Tc = _pick_tile(T, tuple(range(min(T, 32), 0, -1)))          # largest divisor <= 32

    h_tm = pl.pallas_call(
        lstm_recurrence_kernel,
        out_shape=jax.ShapeDtypeStruct((T, Bp, Hp), jnp.bfloat16),
        grid_spec=pltpu.PrefetchScalarGridSpec(
            num_scalar_prefetch=0,
            grid=(num_bb, T // Tc),
            in_specs=[
                pl.BlockSpec((Tc, Bblk, 4 * Hp), lambda bi, ti: (ti, bi, 0)),
                pl.BlockSpec((Tc, Bblk, 1), lambda bi, ti: (ti, bi, 0)),
                pl.BlockSpec((Bblk, Lzp), lambda bi, ti: (bi, 0)),
                pl.BlockSpec((Lzp, Hp), lambda bi, ti: (0, 0)),
                pl.BlockSpec((1, Hp), lambda bi, ti: (0, 0)),
                pl.BlockSpec((Hp, 4 * Hp), lambda bi, ti: (0, 0)),
                pl.BlockSpec((Hp, 4 * Hp), lambda bi, ti: (0, 0)),
                pl.BlockSpec((Hp, 4 * Hp), lambda bi, ti: (0, 0)),
                pl.BlockSpec((1, 4 * Hp), lambda bi, ti: (0, 0)),
            ],
            out_specs=pl.BlockSpec((Tc, Bblk, Hp), lambda bi, ti: (ti, bi, 0)),
            scratch_shapes=[pltpu.VMEM((Bblk, Hp), jnp.float32)] * 4),
        compiler_params=pltpu.CompilerParams(
            dimension_semantics=("parallel", "arbitrary"),
            vmem_limit_bytes=48 * 1024 * 1024),
    )(gin, mask, z, prepped["wlin"], prepped["blin"], prepped["whh0"],
      prepped["wih1"], prepped["whh1"], prepped["b1"])

    # ---- kernel B: tiled vocab projection on batch-major hidden ----
    # Transpose the bf16 hidden (not the f32 logits) so logits come out already
    # (B, T, V)-ordered; M = Bp*T is a multiple of 8 so no wrapper pad is needed.
    h_bm = jnp.transpose(h_tm, (1, 0, 2)).reshape(Bp * T, Hp)
    # NOTE: on v5e prefer tm/tn in the 128..256 range (4x128x128 MXUs, 1 vst slot).
    logits_flat = tiled_matmul_bias(
        h_bm, prepped["wout"], prepped["bout"], out_dtype=jnp.float32,
        tm=_pick_tile(Bp * T, (512, 256, 128, 64, 32, 16, 8)),
        tn=_pick_tile(Vp, (512, 256, 128)),
        tk=_pick_tile(Hp, (512, 256, 128)))

    logits = logits_flat.reshape(Bp, T, Vp)[:B, :, :d["V"]]       # (B, T, vocab)
    return logits


def init_params(key, vocab_size, enc_hidden_dim, latent_dim, hidden_dim):
    emb_dim = 300  # hard-coded in the module
    din = emb_dim + enc_hidden_dim
    ks = jax.random.split(key, 12)

    def init(k, shape, scale=0.1):
        return jax.random.normal(k, shape, jnp.float32) * scale

    H4 = 4 * hidden_dim
    return {
        "emb":     init(ks[0], (vocab_size, emb_dim)),
        "lin_w":   init(ks[1], (hidden_dim, latent_dim)),
        "lin_b":   init(ks[2], (hidden_dim,)),
        "w_ih_l0": init(ks[3], (H4, din)),
        "w_hh_l0": init(ks[4], (H4, hidden_dim)),
        "b_ih_l0": init(ks[5], (H4,)),
        "b_hh_l0": init(ks[6], (H4,)),
        "w_ih_l1": init(ks[7], (H4, hidden_dim)),
        "w_hh_l1": init(ks[8], (H4, hidden_dim)),
        "b_ih_l1": init(ks[9], (H4,)),
        "b_hh_l1": init(ks[10], (H4,)),
        "out_w":   init(ks[11], (vocab_size, hidden_dim)),
        "out_b":   jnp.zeros((vocab_size,), jnp.float32),
    }


if __name__ == "__main__":
    B, T = 2, 8
    vocab_size, enc_hidden_dim, latent_dim, hidden_dim = 64, 16, 8, 32

    root = jax.random.PRNGKey(0)
    k_param, k_tok, k_ctx, k_z, k_drop = jax.random.split(root, 5)

    params = init_params(k_param, vocab_size, enc_hidden_dim, latent_dim,
                         hidden_dim)
    prepped = prepare_decoder_params(params, enc_hidden_dim)

    # build token batch with descending lengths (pack_padded_sequence style)
    lengths = jnp.array([T, T - 2], jnp.int32)
    y_rand = jax.random.randint(k_tok, (B, T), 4, vocab_size, jnp.int32)
    pos = jnp.arange(T)[None, :]
    y = jnp.where(pos < lengths[:, None] - 1, y_rand,
                  jnp.where(pos == lengths[:, None] - 1, EOS_IDX, PAD_IDX))
    y = y.astype(jnp.int32)

    context = jax.random.normal(k_ctx, (B, 1, enc_hidden_dim), jnp.float32)
    large_z = jax.random.normal(k_z, (B, 1, latent_dim), jnp.float32)

    recon_logits = decoder_forward(prepped, y, large_z, context,
                                   word_drop_p=0.1, drop_key=k_drop)
    recon_logits = jax.block_until_ready(recon_logits)

    assert recon_logits.shape == (B, T, vocab_size)
    assert recon_logits.dtype == jnp.float32
    print("KERNEL_OK")
</pallas_src>

<mosaic_0001>
module attributes {stable_mosaic.version = 11 : i64} {
  func.func @_mm_bias_acc_kernel(%arg0: i32, %arg1: i32, %arg2: i32, %arg3: memref<64x128xbf16, #tpu.memory_space<vmem>>, %arg4: memref<128x512xbf16, #tpu.memory_space<vmem>>, %arg5: memref<1x512xf32, #tpu.memory_space<vmem>>, %arg6: memref<64x512xbf16, #tpu.memory_space<vmem>>, %arg7: memref<64x512xf32, #tpu.memory_space<vmem>>) attributes {dimension_semantics = [#tpu.dimension_semantics<parallel>, #tpu.dimension_semantics<parallel>, #tpu.dimension_semantics<arbitrary>], iteration_bounds = array<i64: 1, 1, 3>, scalar_prefetch = 0 : i64, scratch_operands = 1 : i64, tpu.core_type = #tpu.core_type<tc>, window_params = [{transform_indices = @transform_0, window_bounds = array<i64: 64, 128>}, {transform_indices = @transform_1, window_bounds = array<i64: 128, 512>}, {transform_indices = @transform_2, window_bounds = array<i64: 1, 512>}, {transform_indices = @transform_3, window_bounds = array<i64: 64, 512>}]} {
    %c0_i32 = arith.constant 0 : i32
    %0 = arith.cmpi eq, %arg2, %c0_i32 : i32
    %1 = arith.extui %0 : i1 to i32
    %c0_i32_0 = arith.constant 0 : i32
    %2 = arith.cmpi ne, %1, %c0_i32_0 : i32
    scf.if %2 {
      %cst_9 = arith.constant 0.000000e+00 : f32
      %12 = vector.broadcast %cst_9 : f32 to vector<64x512xf32>
      %c0_10 = arith.constant 0 : index
      %c0_11 = arith.constant 0 : index
      %13 = vector.load %arg7[%c0_10, %c0_11] : memref<64x512xf32, #tpu.memory_space<vmem>>, vector<64x512xf32>
      tpu.vector_store %arg7[%c0_10, %c0_11], %12 {strides = array<i32>} : memref<64x512xf32, #tpu.memory_space<vmem>>, vector<64x512xf32>,
    } else {
    }
    %c0 = arith.constant 0 : index
    %c0_1 = arith.constant 0 : index
    %3 = vector.load %arg7[%c0, %c0_1] : memref<64x512xf32, #tpu.memory_space<vmem>>, vector<64x512xf32>
    %c0_2 = arith.constant 0 : index
    %c0_3 = arith.constant 0 : index
    %4 = vector.load %arg3[%c0_2, %c0_3] : memref<64x128xbf16, #tpu.memory_space<vmem>>, vector<64x128xbf16>
    %c0_4 = arith.constant 0 : index
    %c0_5 = arith.constant 0 : index
    %5 = vector.load %arg4[%c0_4, %c0_5] : memref<128x512xbf16, #tpu.memory_space<vmem>>, vector<128x512xbf16>
    %cst = arith.constant dense<0.000000e+00> : vector<64x512xf32>
    %6 = tpu.matmul %4, %5, %cst {dimension_numbers = #tpu.dot_dimension_numbers<[1], [0], [0], [1], [0, 0, 1, 1], [], []>} : vector<64x128xbf16>, vector<128x512xbf16>, vector<64x512xf32> -> vector<64x512xf32>
    %7 = arith.addf %3, %6 : vector<64x512xf32>
    %c0_6 = arith.constant 0 : index
    %c0_7 = arith.constant 0 : index
    %8 = vector.load %arg7[%c0_6, %c0_7] : memref<64x512xf32, #tpu.memory_space<vmem>>, vector<64x512xf32>
    tpu.vector_store %arg7[%c0_6, %c0_7], %7 {strides = array<i32>} : memref<64x512xf32, #tpu.memory_space<vmem>>, vector<64x512xf32>,
    %c2_i32 = arith.constant 2 : i32
    %9 = arith.cmpi eq, %arg2, %c2_i32 : i32
    %10 = arith.extui %9 : i1 to i32
    %c0_i32_8 = arith.constant 0 : i32
    %11 = arith.cmpi ne, %10, %c0_i32_8 : i32
    scf.if %11 {
      %c0_9 = arith.constant 0 : index
      %c0_10 = arith.constant 0 : index
      %12 = vector.load %arg7[%c0_9, %c0_10] : memref<64x512xf32, #tpu.memory_space<vmem>>, vector<64x512xf32>
      %c0_11 = arith.constant 0 : index
      %c0_12 = arith.constant 0 : index
      %13 = vector.load %arg5[%c0_11, %c0_12] : memref<1x512xf32, #tpu.memory_space<vmem>>, vector<1x512xf32>
      %14 = vector.broadcast %13 : vector<1x512xf32> to vector<64x512xf32>
      %15 = arith.addf %12, %14 : vector<64x512xf32>
      %16 = arith.truncf %15 : vector<64x512xf32> to vector<64x512xbf16>
      %c0_13 = arith.constant 0 : index
      %c0_14 = arith.constant 0 : index
      %17 = vector.load %arg6[%c0_13, %c0_14] : memref<64x512xbf16, #tpu.memory_space<vmem>>, vector<64x512xbf16>
      tpu.vector_store %arg6[%c0_13, %c0_14], %16 {strides = array<i32>} : memref<64x512xbf16, #tpu.memory_space<vmem>>, vector<64x512xbf16>,
    } else {
    }
    return
  }
  func.func @transform_0(%arg0: i32, %arg1: i32, %arg2: i32) -> (i32, i32) {
    %c0_i32 = arith.constant 0 : i32
    return %arg0, %arg2 : i32, i32
  }
  func.func @transform_1(%arg0: i32, %arg1: i32, %arg2: i32) -> (i32, i32) {
    %c0_i32 = arith.constant 0 : i32
    return %arg2, %arg1 : i32, i32
  }
  func.func @transform_2(%arg0: i32, %arg1: i32, %arg2: i32) -> (i32, i32) {
    %c0_i32 = arith.constant 0 : i32
    %c0_i32_0 = arith.constant 0 : i32
    return %c0_i32, %arg1 : i32, i32
  }
  func.func @transform_3(%arg0: i32, %arg1: i32, %arg2: i32) -> (i32, i32) {
    %c0_i32 = arith.constant 0 : i32
    return %arg0, %arg1 : i32, i32
  }
}

</mosaic_0001>

<llo_original>
// kernel: tpu_custom_call.1
$region0: #{tpu_custom_call.1}
  #allocation0 [shape = 'u32[]', space=smem, size = 0x4, offset = 0x4, fixed_abs, tag = 'smem constant byte address 0x4 - core index']
  #allocation1 [shape = 'u32[72,128]{1,0:T(1,128)}', space=vmem, size = 0x9000, scoped, tag = 'internal scratch']
  #allocation2 [shape = 'f32[64,512]{1,0:T(8,128)}', space=vmem, size = 0x20000, scoped, tag = 'scratch operand']
  %s0 = inlined_call_operand.hbm [shape: bf16[64,384], index: 0, kind: input, shape index: {}]
  %s1 = inlined_call_operand.hbm [shape: bf16[384,512], index: 1, kind: input, shape index: {}]
  %s2 = inlined_call_operand.hbm [shape: f32[1,512], index: 2, kind: input, shape index: {}]
  %s3 = inlined_call_operand.hbm [shape: bf16[64,512], index: 3, kind: output, shape index: {}]
  %s4 = sld [smem:[#allocation0]]
  $region65: #{tpu_custom_call.1} parent=0
    _
  %s6 = ssub.s32 1, %s4
  %s7 = scalar_select 0, %s6, %s4
  $region1: #{tpu_custom_call.1} parent=0
    #allocation3 [shape = 'u8[32768]{0}', space=vmem, size = 0x8000, scoped, tag = 'input window, operand 0']
    #allocation4 [shape = 's32[2]{0}', space=sflag, size = 0x8, scoped, tag = 'scoped memory for tpu_custom_call.1']
    #allocation5 [shape = 's32[2]{0}', space=sflag, size = 0x8, scoped, tag = 'scoped memory for tpu_custom_call.1']
    #allocation6 [shape = 'u8[262144]{0}', space=vmem, size = 0x40000, scoped, tag = 'input window, operand 1']
    #allocation7 [shape = 's32[2]{0}', space=sflag, size = 0x8, scoped, tag = 'scoped memory for tpu_custom_call.1']
    #allocation8 [shape = 'u8[2048]{0}', space=vmem, size = 0x800, scoped, tag = 'input window, operand 2, single buffered']
    #allocation9 [shape = 'u8[65536]{0}', space=vmem, size = 0x10000, scoped, tag = 'output window, operand 0, single buffered']
    %8 = vsyncpa [#allocation4], 0
    %s9 = scalar_lea.sflag [#allocation4], 1
    %10 = vsyncpa %s9, 0
    %11 = vsyncpa [#allocation7], 0
    %s12 = scalar_lea.sflag [#allocation7], 1
    %13 = vsyncpa %s12, 0
    %14 = vsyncpa [#allocation5], 0
    loop: start=0, step=1, limit=5
    $region2: #{tpu_custom_call.1} parent=1 // loop_pre_header
      _
    $region3: #{tpu_custom_call.1} parent=1 // loop_header
      %s16 = sphi 0, %s20
      %p17 = scmp.ge.s32.totalorder %s16, 5
      %s23 = sphi 0, %s42
      %s24 = sphi 0, %s38
      %s25 = sphi 0, %s34
      %s26 = sphi 0, %s23
      %s27 = sphi 0, %s24
      %s28 = sphi 0, %s25
      %s29 = sphi 0, %s26
      %s30 = sphi 0, %s27
      %s31 = sphi 0, %s28
      %s47 = sphi 0, %s49
      %s50 = sphi 0, %s47
      %s51 = sphi 0, %s50
      %s67 = sphi 0, %s51
      %s75 = sphi 0, %s77
      %s78 = sphi 0, %s75
      %s79 = sphi 0, %s78
      %s95 = sphi 0, %s79
      %s101 = sphi 0, %s103
      %s104 = sphi 0, %s101
      %s105 = sphi 0, %s104
      %s121 = sphi 0, %s105
      %s129 = sphi 0, %s131
      %s132 = sphi 0, %s129
      %s133 = sphi 0, %s132
      %s149 = sphi 0, %s133
    $region4: #{tpu_custom_call.1} parent=1 // loop_header_branch
      %19 = sbr.rel (%p17) target = $region8
    $region5: #{tpu_custom_call.1} parent=1 // loop_body
      %s21 = ssub.s32 %s16, 1
      %s22 = ssub.s32 %s16, 2
      %s32 = sadd.s32 1, %s25
      %p33 = scmp.ge.s32.totalorder %s32, 3
      %s34 = scalar_select %p33, 0, %s32
      %s35 = sadd.s32 1, %s24
      %s36 = scalar_select %p33, %s35, %s24
      %p37 = scmp.ge.s32.totalorder %s36, 1
      %s38 = scalar_select %p37, 0, %s36
      %s39 = sadd.s32 1, %s23
      %s40 = scalar_select %p37, %s39, %s23
      %p41 = scmp.ge.s32.totalorder %s40, 1
      %s42 = scalar_select %p41, 0, %s40
      %s43 = ssub.s32 %s23, %s42
      %s44 = ssub.s32 %s25, %s34
      %s45 = sor.u32 %s43, %s44
      %p46 = scmp.eq.s32.totalorder %s45, 0
      %s48 = sadd.s32 %s47, 1
      %s49 = scalar_select %p46, %s47, %s48
      %p52 = pneg %p46
      %p53 = scmp.eq.s32.totalorder %s16, 2
      %p54 = por %p52, %p53
      %p55 = scmp.ne.s32.totalorder %s47, %s50
      %p56 = scmp.eq.s32.totalorder %s16, 0
      %p57 = por %p55, %p56
      %p58 = scmp.ne.s32.totalorder %s47, %s50
      %p59 = scmp.eq.s32.totalorder %s21, 2
      %p60 = por %p58, %p59
      %p61 = scmp.ne.s32.totalorder %s50, %s51
      %p62 = scmp.eq.s32.totalorder %s21, 0
      %p63 = por %p61, %p62
      %p64 = scmp.ne.s32.totalorder %s50, %s51
      %p65 = scmp.eq.s32.totalorder %s22, 2
      %p66 = por %p64, %p65
      %p68 = scmp.ne.s32.totalorder %s51, %s67
      %p69 = scmp.eq.s32.totalorder %s22, 0
      %p70 = por %p68, %p69
      %s71 = ssub.s32 %s25, %s34
      %s72 = ssub.s32 %s24, %s38
      %s73 = sor.u32 %s71, %s72
      %p74 = scmp.eq.s32.totalorder %s73, 0
      %s76 = sadd.s32 %s75, 1
      %s77 = scalar_select %p74, %s75, %s76
      %p80 = pneg %p74
      %p81 = scmp.eq.s32.totalorder %s16, 2
      %p82 = por %p80, %p81
      %p83 = scmp.ne.s32.totalorder %s75, %s78
      %p84 = scmp.eq.s32.totalorder %s16, 0
      %p85 = por %p83, %p84
      %p86 = scmp.ne.s32.totalorder %s75, %s78
      %p87 = scmp.eq.s32.totalorder %s21, 2
      %p88 = por %p86, %p87
      %p89 = scmp.ne.s32.totalorder %s78, %s79
      %p90 = scmp.eq.s32.totalorder %s21, 0
      %p91 = por %p89, %p90
      %p92 = scmp.ne.s32.totalorder %s78, %s79
      %p93 = scmp.eq.s32.totalorder %s22, 2
      %p94 = por %p92, %p93
      %p96 = scmp.ne.s32.totalorder %s79, %s95
      %p97 = scmp.eq.s32.totalorder %s22, 0
      %p98 = por %p96, %p97
      %s99 = ssub.s32 %s24, %s38
      %p100 = scmp.eq.s32.totalorder %s99, 0
      %s102 = sadd.s32 %s101, 1
      %s103 = scalar_select %p100, %s101, %s102
      %p106 = pneg %p100
      %p107 = scmp.eq.s32.totalorder %s16, 2
      %p108 = por %p106, %p107
      %p109 = scmp.ne.s32.totalorder %s101, %s104
      %p110 = scmp.eq.s32.totalorder %s16, 0
      %p111 = por %p109, %p110
      %p112 = scmp.ne.s32.totalorder %s101, %s104
      %p113 = scmp.eq.s32.totalorder %s21, 2
      %p114 = por %p112, %p113
      %p115 = scmp.ne.s32.totalorder %s104, %s105
      %p116 = scmp.eq.s32.totalorder %s21, 0
      %p117 = por %p115, %p116
      %p118 = scmp.ne.s32.totalorder %s104, %s105
      %p119 = scmp.eq.s32.totalorder %s22, 2
      %p120 = por %p118, %p119
      %p122 = scmp.ne.s32.totalorder %s105, %s121
      %p123 = scmp.eq.s32.totalorder %s22, 0
      %p124 = por %p122, %p123
      %s125 = ssub.s32 %s23, %s42
      %s126 = ssub.s32 %s24, %s38
      %s127 = sor.u32 %s125, %s126
      %p128 = scmp.eq.s32.totalorder %s127, 0
      %s130 = sadd.s32 %s129, 1
      %s131 = scalar_select %p128, %s129, %s130
      %p134 = pneg %p128
      %p135 = scmp.eq.s32.totalorder %s16, 2
      %p136 = por %p134, %p135
      %p137 = scmp.ne.s32.totalorder %s129, %s132
      %p138 = scmp.eq.s32.totalorder %s16, 0
      %p139 = por %p137, %p138
      %p140 = scmp.ne.s32.totalorder %s129, %s132
      %p141 = scmp.eq.s32.totalorder %s21, 2
      %p142 = por %p140, %p141
      %p143 = scmp.ne.s32.totalorder %s132, %s133
      %p144 = scmp.eq.s32.totalorder %s21, 0
      %p145 = por %p143, %p144
      %p146 = scmp.ne.s32.totalorder %s132, %s133
      %p147 = scmp.eq.s32.totalorder %s22, 2
      %p148 = por %p146, %p147
      %p150 = scmp.ne.s32.totalorder %s133, %s149
      %p151 = scmp.eq.s32.totalorder %s22, 0
      %p152 = por %p150, %p151
      %p153 = scmp.le.s32.totalorder 1, %s16
      %p154 = scmp.lt.s32.totalorder %s16, 4
      %p155 = pnand %p153, %p154
      %p156 = pneg %p155
      // Predicated region
      $region9: #{tpu_custom_call.1} parent=5 // pred_check
        _
      $region10: #{tpu_custom_call.1} parent=5 // pred_check_branch
        %158 = sbr.rel (%p155) target = $region12
      $region11: #{tpu_custom_call.1} parent=5 // pred_region
        %s159 = ssub.s32 %s16, 1
        // Predicated region
        $region13: #{tpu_custom_call.1} parent=11 // pred_check
          %p160 = pneg %p117
        $region14: #{tpu_custom_call.1} parent=11 // pred_check_branch
          %162 = sbr.rel (%p160) target = $region16
        $region15: #{tpu_custom_call.1} parent=11 // pred_region
          %s163 = smul.u32 4, %s27
          %165 = vsyncadd [#allocation7], 0
          %s166 = scalar_lea.hbm %s2, %s163
          %s168 = sshll.u32 %s166, 4
          %s169 = int_to_ptr.hbm [resolvable:$true] %s168
          %s170 = sshll.u32 [#allocation8], 4
          %s171 = int_to_ptr.vmem [resolvable:$true] %s170
          %173 = dma.hbm_to_vmem [thread:$0]  %s169, 64, %s171, [#allocation7]
        $region16: #{tpu_custom_call.1} parent=11 // pred_fallthru
          _
      $region12: #{tpu_custom_call.1} parent=5 // pred_fallthru
        _
      %p174 = scmp.lt.s32.totalorder %s16, 3
      // Predicated region
      $region17: #{tpu_custom_call.1} parent=5 // pred_check
        %p175 = pneg %p174
      $region18: #{tpu_custom_call.1} parent=5 // pred_check_branch
        %177 = sbr.rel (%p175) target = $region20
      $region19: #{tpu_custom_call.1} parent=5 // pred_region
        // Predicated region
        $region21: #{tpu_custom_call.1} parent=19 // pred_check
          %p178 = pneg %p57
        $region22: #{tpu_custom_call.1} parent=19 // pred_check_branch
          %180 = sbr.rel (%p178) target = $region24
        $region23: #{tpu_custom_call.1} parent=19 // pred_region
          %s181 = sand.u32 %s47, 1
          %s182 = scalar_lea.sflag [#allocation4], %s181
          %s183 = sand.u32 %s47, 1
          %s184 = smul.addr %s183, 32
          %s185 = scalar_lea.vmem [#allocation3], %s184
          %s186 = smul.u32 8, %s23
          %188 = vsyncadd %s182, 0
          %s189 = smul.addr %s186, 3
          %s190 = sadd.s32 %s25, %s189
          %s191 = smul.addr %s190, 4
          %s192 = scalar_lea.hbm %s0, %s191
          %s193 = sshll.u32 %s192, 4
          %s194 = int_to_ptr.hbm [resolvable:$true] %s193
          %s195 = sshll.u32 %s185, 4
          %s196 = int_to_ptr.vmem [resolvable:$true] %s195
          %201 = dma.hbm_to_vmem [thread:$0]  %s194, 512, %s196, %s182, 192, 64, 4
        $region24: #{tpu_custom_call.1} parent=19 // pred_fallthru
          _
        // Predicated region
        $region25: #{tpu_custom_call.1} parent=19 // pred_check
          %p202 = pneg %p85
        $region26: #{tpu_custom_call.1} parent=19 // pred_check_branch
          %204 = sbr.rel (%p202) target = $region28
        $region27: #{tpu_custom_call.1} parent=19 // pred_region
          %s205 = sand.u32 %s16, 1
          %s206 = scalar_lea.sflag [#allocation7], %s205
          %s207 = sand.u32 %s75, 1
          %s208 = smul.addr %s207, 256
          %s209 = scalar_lea.vmem [#allocation6], %s208
          %s210 = smul.u32 16, %s25
          %s211 = smul.u32 4, %s24
          %213 = vsyncadd %s206, 0
          %s214 = smul.addr %s210, 4
          %s215 = sadd.s32 %s211, %s214
          %s216 = smul.addr %s215, 4
          %s217 = scalar_lea.hbm %s1, %s216
          %s218 = sshll.u32 %s217, 4
          %s219 = int_to_ptr.hbm [resolvable:$true] %s218
          %s220 = sshll.u32 %s209, 4
          %s221 = int_to_ptr.vmem [resolvable:$true] %s220
          %226 = dma.hbm_to_vmem [thread:$0]  %s219, 4096, %s221, %s206, 256, 256, 16
        $region28: #{tpu_custom_call.1} parent=19 // pred_fallthru
          _
      $region20: #{tpu_custom_call.1} parent=5 // pred_fallthru
        _
      %p227 = scmp.le.s32.totalorder 1, %s16
      %p228 = scmp.lt.s32.totalorder %s16, 4
      %p229 = pnand %p227, %p228
      %p230 = pneg %p229
      // Predicated region
      $region29: #{tpu_custom_call.1} parent=5 // pred_check
        _
      $region30: #{tpu_custom_call.1} parent=5 // pred_check_branch
        %232 = sbr.rel (%p229) target = $region32
      $region31: #{tpu_custom_call.1} parent=5 // pred_region
        %s233 = ssub.s32 %s16, 1
        %s234 = sand.u32 %s50, 1
        %s235 = scalar_lea.sflag [#allocation4], %s234
        %s236 = sand.u32 %s50, 1
        %s237 = smul.addr %s236, 32
        %s238 = scalar_lea.vmem [#allocation3], %s237
        // Predicated region
        $region33: #{tpu_custom_call.1} parent=31 // pred_check
          %p239 = pneg %p63
        $region34: #{tpu_custom_call.1} parent=31 // pred_check_branch
          %241 = sbr.rel (%p239) target = $region36
        $region35: #{tpu_custom_call.1} parent=31 // pred_region
          %243 = dma.done %s235, 512
        $region36: #{tpu_custom_call.1} parent=31 // pred_fallthru
          _
        %s244 = sand.u32 %s21, 1
        %s245 = scalar_lea.sflag [#allocation7], %s244
        %s246 = sand.u32 %s78, 1
        %s247 = smul.addr %s246, 256
        %s248 = scalar_lea.vmem [#allocation6], %s247
        // Predicated region
        $region37: #{tpu_custom_call.1} parent=31 // pred_check
          %p249 = pneg %p91
        $region38: #{tpu_custom_call.1} parent=31 // pred_check_branch
          %251 = sbr.rel (%p249) target = $region40
        $region39: #{tpu_custom_call.1} parent=31 // pred_region
          %253 = dma.done %s245, 4096
        $region40: #{tpu_custom_call.1} parent=31 // pred_fallthru
          _
        // Predicated region
        $region41: #{tpu_custom_call.1} parent=31 // pred_check
          %p254 = pneg %p117
        $region42: #{tpu_custom_call.1} parent=31 // pred_check_branch
          %256 = sbr.rel (%p254) target = $region44
        $region43: #{tpu_custom_call.1} parent=31 // pred_region
          %258 = dma.done [#allocation7], 64
        $region44: #{tpu_custom_call.1} parent=31 // pred_fallthru
          _
        %s259 = sand.u32 %s50, 1
        %s260 = scalar_lea.sflag [#allocation4], %s259
        %s261 = sand.u32 %s50, 1
        %s262 = smul.addr %s261, 32
        %s263 = scalar_lea.vmem [#allocation3], %s262
        %p264 = pneg %p63
        %p265 = pneg %p60
        %s266 = sand.u32 %s21, 1
        %s267 = scalar_lea.sflag [#allocation7], %s266
        %s268 = sand.u32 %s78, 1
        %s269 = smul.addr %s268, 256
        %s270 = scalar_lea.vmem [#allocation6], %s269
        %p271 = pneg %p91
        %p272 = pneg %p88
        %p273 = pneg %p117
        %p274 = pneg %p114
        %p275 = pneg %p145
        %p276 = pneg %p142
        %s277 = smul.u32 8, %s26
        %s278 = smul.u32 16, %s28
        %s279 = smul.u32 4, %s27
        %s280 = smul.u32 4, %s27
        %s281 = smul.u32 8, %s26
        %s282 = smul.u32 4, %s27
        %p283 = scmp.eq.s32.totalorder %s28, 0
        // Predicated region
        $region45: #{tpu_custom_call.1} parent=31 // pred_check
          %p284 = pneg %p283
        $region46: #{tpu_custom_call.1} parent=31 // pred_check_branch
          %286 = sbr.rel (%p284) target = $region48
        $region47: #{tpu_custom_call.1} parent=31 // pred_region
          %287 = vst [vmem:[#allocation2] sm:$0xff] 0.0
          %288 = vst [vmem:[#allocation2 + $0x8] sm:$0xff] 0.0
          %289 = vst [vmem:[#allocation2 + $0x10] sm:$0xff] 0.0
          %290 = vst [vmem:[#allocation2 + $0x18] sm:$0xff] 0.0
          %291 = vst [vmem:[#allocation2 + $0x20] sm:$0xff] 0.0
          %292 = vst [vmem:[#allocation2 + $0x28] sm:$0xff] 0.0
          %293 = vst [vmem:[#allocation2 + $0x30] sm:$0xff] 0.0
          %294 = vst [vmem:[#allocation2 + $0x38] sm:$0xff] 0.0
          %295 = vst [vmem:[#allocation2 + $0x40] sm:$0xff] 0.0
          %296 = vst [vmem:[#allocation2 + $0x48] sm:$0xff] 0.0
          %297 = vst [vmem:[#allocation2 + $0x50] sm:$0xff] 0.0
          %298 = vst [vmem:[#allocation2 + $0x58] sm:$0xff] 0.0
          %299 = vst [vmem:[#allocation2 + $0x60] sm:$0xff] 0.0
          %300 = vst [vmem:[#allocation2 + $0x68] sm:$0xff] 0.0
          %301 = vst [vmem:[#allocation2 + $0x70] sm:$0xff] 0.0
          %302 = vst [vmem:[#allocation2 + $0x78] sm:$0xff] 0.0
          %303 = vst [vmem:[#allocation2 + $0x80] sm:$0xff] 0.0
          %304 = vst [vmem:[#allocation2 + $0x88] sm:$0xff] 0.0
          %305 = vst [vmem:[#allocation2 + $0x90] sm:$0xff] 0.0
          %306 = vst [vmem:[#allocation2 + $0x98] sm:$0xff] 0.0
          %307 = vst [vmem:[#allocation2 + $0xa0] sm:$0xff] 0.0
          %308 = vst [vmem:[#allocation2 + $0xa8] sm:$0xff] 0.0
          %309 = vst [vmem:[#allocation2 + $0xb0] sm:$0xff] 0.0
          %310 = vst [vmem:[#allocation2 + $0xb8] sm:$0xff] 0.0
          %311 = vst [vmem:[#allocation2 + $0xc0] sm:$0xff] 0.0
          %312 = vst [vmem:[#allocation2 + $0xc8] sm:$0xff] 0.0
          %313 = vst [vmem:[#allocation2 + $0xd0] sm:$0xff] 0.0
          %314 = vst [vmem:[#allocation2 + $0xd8] sm:$0xff] 0.0
          %315 = vst [vmem:[#allocation2 + $0xe0] sm:$0xff] 0.0
          %316 = vst [vmem:[#allocation2 + $0xe8] sm:$0xff] 0.0
          %317 = vst [vmem:[#allocation2 + $0xf0] sm:$0xff] 0.0
          %318 = vst [vmem:[#allocation2 + $0xf8] sm:$0xff] 0.0
        $region48: #{tpu_custom_call.1} parent=31 // pred_fallthru
          _
        %v319 = vld [vmem:[#allocation2] sm:$0xff]
        %v320 = vld [vmem:[#allocation2 + $0x8] sm:$0xff]
        %v321 = vld [vmem:[#allocation2 + $0x10] sm:$0xff]
        %v322 = vld [vmem:[#allocation2 + $0x18] sm:$0xff]
        %v323 = vld [vmem:[#allocation2 + $0x20] sm:$0xff]
        %v324 = vld [vmem:[#allocation2 + $0x28] sm:$0xff]
        %v325 = vld [vmem:[#allocation2 + $0x30] sm:$0xff]
        %v326 = vld [vmem:[#allocation2 + $0x38] sm:$0xff]
        %v327 = vld [vmem:[#allocation2 + $0x40] sm:$0xff]
        %v328 = vld [vmem:[#allocation2 + $0x48] sm:$0xff]
        %v329 = vld [vmem:[#allocation2 + $0x50] sm:$0xff]
        %v330 = vld [vmem:[#allocation2 + $0x58] sm:$0xff]
        %v331 = vld [vmem:[#allocation2 + $0x60] sm:$0xff]
        %v332 = vld [vmem:[#allocation2 + $0x68] sm:$0xff]
        %v333 = vld [vmem:[#allocation2 + $0x70] sm:$0xff]
        %v334 = vld [vmem:[#allocation2 + $0x78] sm:$0xff]
        %v335 = vld [vmem:[#allocation2 + $0x80] sm:$0xff]
        %v336 = vld [vmem:[#allocation2 + $0x88] sm:$0xff]
        %v337 = vld [vmem:[#allocation2 + $0x90] sm:$0xff]
        %v338 = vld [vmem:[#allocation2 + $0x98] sm:$0xff]
        %v339 = vld [vmem:[#allocation2 + $0xa0] sm:$0xff]
        %v340 = vld [vmem:[#allocation2 + $0xa8] sm:$0xff]
        %v341 = vld [vmem:[#allocation2 + $0xb0] sm:$0xff]
        %v342 = vld [vmem:[#allocation2 + $0xb8] sm:$0xff]
        %v343 = vld [vmem:[#allocation2 + $0xc0] sm:$0xff]
        %v344 = vld [vmem:[#allocation2 + $0xc8] sm:$0xff]
        %v345 = vld [vmem:[#allocation2 + $0xd0] sm:$0xff]
        %v346 = vld [vmem:[#allocation2 + $0xd8] sm:$0xff]
        %v347 = vld [vmem:[#allocation2 + $0xe0] sm:$0xff]
        %v348 = vld [vmem:[#allocation2 + $0xe8] sm:$0xff]
        %v349 = vld [vmem:[#allocation2 + $0xf0] sm:$0xff]
        %v350 = vld [vmem:[#allocation2 + $0xf8] sm:$0xff]
        %v351 = vld [vmem:[%s238] sm:$0xf]
        %v352 = vld [vmem:[%s238 + $0x4] sm:$0xf]
        %v353 = vld [vmem:[%s238 + $0x8] sm:$0xf]
        %v354 = vld [vmem:[%s238 + $0xc] sm:$0xf]
        %v355 = vld [vmem:[%s238 + $0x10] sm:$0xf]
        %v356 = vld [vmem:[%s238 + $0x14] sm:$0xf]
        %v357 = vld [vmem:[%s238 + $0x18] sm:$0xf]
        %v358 = vld [vmem:[%s238 + $0x1c] sm:$0xf]
        %v359 = vld [vmem:[%s248] sm:$0xff]
        %v360 = vld [vmem:[%s248 + $0x8] sm:$0xff]
        %v361 = vld [vmem:[%s248 + $0x10] sm:$0xff]
        %v362 = vld [vmem:[%s248 + $0x18] sm:$0xff]
        %v363 = vld [vmem:[%s248 + $0x20] sm:$0xff]
        %v364 = vld [vmem:[%s248 + $0x28] sm:$0xff]
        %v365 = vld [vmem:[%s248 + $0x30] sm:$0xff]
        %v366 = vld [vmem:[%s248 + $0x38] sm:$0xff]
        %v367 = vld [vmem:[%s248 + $0x40] sm:$0xff]
        %v368 = vld [vmem:[%s248 + $0x48] sm:$0xff]
        %v369 = vld [vmem:[%s248 + $0x50] sm:$0xff]
        %v370 = vld [vmem:[%s248 + $0x58] sm:$0xff]
        %v371 = vld [vmem:[%s248 + $0x60] sm:$0xff]
        %v372 = vld [vmem:[%s248 + $0x68] sm:$0xff]
        %v373 = vld [vmem:[%s248 + $0x70] sm:$0xff]
        %v374 = vld [vmem:[%s248 + $0x78] sm:$0xff]
        %v375 = vld [vmem:[%s248 + $0x80] sm:$0xff]
        %v376 = vld [vmem:[%s248 + $0x88] sm:$0xff]
        %v377 = vld [vmem:[%s248 + $0x90] sm:$0xff]
        %v378 = vld [vmem:[%s248 + $0x98] sm:$0xff]
        %v379 = vld [vmem:[%s248 + $0xa0] sm:$0xff]
        %v380 = vld [vmem:[%s248 + $0xa8] sm:$0xff]
        %v381 = vld [vmem:[%s248 + $0xb0] sm:$0xff]
        %v382 = vld [vmem:[%s248 + $0xb8] sm:$0xff]
        %v383 = vld [vmem:[%s248 + $0xc0] sm:$0xff]
        %v384 = vld [vmem:[%s248 + $0xc8] sm:$0xff]
        %v385 = vld [vmem:[%s248 + $0xd0] sm:$0xff]
        %v386 = vld [vmem:[%s248 + $0xd8] sm:$0xff]
        %v387 = vld [vmem:[%s248 + $0xe0] sm:$0xff]
        %v388 = vld [vmem:[%s248 + $0xe8] sm:$0xff]
        %v389 = vld [vmem:[%s248 + $0xf0] sm:$0xff]
        %v390 = vld [vmem:[%s248 + $0xf8] sm:$0xff]
        %v399 = vunpack.c.l.b16 %v351
        %v400 = vunpack.c.l.b16 %v352
        %v401 = vunpack.c.l.b16 %v353
        %v402 = vunpack.c.l.b16 %v354
        %v403 = vunpack.c.l.b16 %v355
        %v404 = vunpack.c.l.b16 %v356
        %v405 = vunpack.c.l.b16 %v357
        %v406 = vunpack.c.l.b16 %v358
        %v407 = vpack.c.b16 %v400, %v399
        %v408 = vpack.c.b16 %v402, %v401
        %v409 = vpack.c.b16 %v404, %v403
        %v410 = vpack.c.b16 %v406, %v405
        %v447 = vunpack.c.l.b16 %v359
        %v448 = vunpack.c.h.b16 %v359
        %v449 = vunpack.c.l.b16 %v360
        %v450 = vunpack.c.h.b16 %v360
        %v451 = vunpack.c.l.b16 %v361
        %v452 = vunpack.c.h.b16 %v361
        %v453 = vunpack.c.l.b16 %v362
        %v454 = vunpack.c.h.b16 %v362
        %v455 = vunpack.c.l.b16 %v363
        %v456 = vunpack.c.h.b16 %v363
        %v457 = vunpack.c.l.b16 %v364
        %v458 = vunpack.c.h.b16 %v364
        %v459 = vunpack.c.l.b16 %v365
        %v460 = vunpack.c.h.b16 %v365
        %v461 = vunpack.c.l.b16 %v366
        %v462 = vunpack.c.h.b16 %v366
        %v463 = vunpack.c.l.b16 %v367
        %v464 = vunpack.c.h.b16 %v367
        %v465 = vunpack.c.l.b16 %v368
        %v466 = vunpack.c.h.b16 %v368
        %v467 = vunpack.c.l.b16 %v369
        %v468 = vunpack.c.h.b16 %v369
        %v469 = vunpack.c.l.b16 %v370
        %v470 = vunpack.c.h.b16 %v370
        %v471 = vunpack.c.l.b16 %v371
        %v472 = vunpack.c.h.b16 %v371
        %v473 = vunpack.c.l.b16 %v372
        %v474 = vunpack.c.h.b16 %v372
        %v475 = vunpack.c.l.b16 %v373
        %v476 = vunpack.c.h.b16 %v373
        %v477 = vunpack.c.l.b16 %v374
        %v478 = vunpack.c.h.b16 %v374
        %v479 = vunpack.c.l.b16 %v375
        %v480 = vunpack.c.h.b16 %v375
        %v481 = vunpack.c.l.b16 %v376
        %v482 = vunpack.c.h.b16 %v376
        %v483 = vunpack.c.l.b16 %v377
        %v484 = vunpack.c.h.b16 %v377
        %v485 = vunpack.c.l.b16 %v378
        %v486 = vunpack.c.h.b16 %v378
        %v487 = vunpack.c.l.b16 %v379
        %v488 = vunpack.c.h.b16 %v379
        %v489 = vunpack.c.l.b16 %v380
        %v490 = vunpack.c.h.b16 %v380
        %v491 = vunpack.c.l.b16 %v381
        %v492 = vunpack.c.h.b16 %v381
        %v493 = vunpack.c.l.b16 %v382
        %v494 = vunpack.c.h.b16 %v382
        %v495 = vunpack.c.l.b16 %v383
        %v496 = vunpack.c.h.b16 %v383
        %v497 = vunpack.c.l.b16 %v384
        %v498 = vunpack.c.h.b16 %v384
        %v499 = vunpack.c.l.b16 %v385
        %v500 = vunpack.c.h.b16 %v385
        %v501 = vunpack.c.l.b16 %v386
        %v502 = vunpack.c.h.b16 %v386
        %v503 = vunpack.c.l.b16 %v387
        %v504 = vunpack.c.h.b16 %v387
        %v505 = vunpack.c.l.b16 %v388
        %v506 = vunpack.c.h.b16 %v388
        %v507 = vunpack.c.l.b16 %v389
        %v508 = vunpack.c.h.b16 %v389
        %v509 = vunpack.c.l.b16 %v390
        %v510 = vunpack.c.h.b16 %v390
        %v511 = vpack.c.b16 %v451, %v447
        %v512 = vpack.c.b16 %v452, %v448
        %v513 = vpack.c.b16 %v453, %v449
        %v514 = vpack.c.b16 %v454, %v450
        %v515 = vpack.c.b16 %v459, %v455
        %v516 = vpack.c.b16 %v460, %v456
        %v517 = vpack.c.b16 %v461, %v457
        %v518 = vpack.c.b16 %v462, %v458
        %v519 = vpack.c.b16 %v467, %v463
        %v520 = vpack.c.b16 %v468, %v464
        %v521 = vpack.c.b16 %v469, %v465
        %v522 = vpack.c.b16 %v470, %v466
        %v523 = vpack.c.b16 %v475, %v471
        %v524 = vpack.c.b16 %v476, %v472
        %v525 = vpack.c.b16 %v477, %v473
        %v526 = vpack.c.b16 %v478, %v474
        %v527 = vpack.c.b16 %v483, %v479
        %v528 = vpack.c.b16 %v484, %v480
        %v529 = vpack.c.b16 %v485, %v481
        %v530 = vpack.c.b16 %v486, %v482
        %v531 = vpack.c.b16 %v491, %v487
        %v532 = vpack.c.b16 %v492, %v488
        %v533 = vpack.c.b16 %v493, %v489
        %v534 = vpack.c.b16 %v494, %v490
        %v535 = vpack.c.b16 %v499, %v495
        %v536 = vpack.c.b16 %v500, %v496
        %v537 = vpack.c.b16 %v501, %v497
        %v538 = vpack.c.b16 %v502, %v498
        %v539 = vpack.c.b16 %v507, %v503
        %v540 = vpack.c.b16 %v508, %v504
        %v541 = vpack.c.b16 %v509, %v505
        %v542 = vpack.c.b16 %v510, %v506
        %575 = vmatpush.bf16.msra.mxu0 %v539
        %576 = vmatpush.bf16.msra.mxu0 %v535
        %577 = vmatpush.bf16.msra.mxu0 %v531
        %578 = vmatpush.bf16.msra.mxu0 %v527
        %579 = vmatpush.bf16.msra.mxu0 %v523
        %580 = vmatpush.bf16.msra.mxu0 %v519
        %581 = vmatpush.bf16.msra.mxu0 %v515
        %582 = vmatpush.bf16.msra.mxu0 %v511
        %583 = vmatmul.bf16.gmra.mxu0 %v407
        %v584 = vpop.f32.mrf.mxu0
        %v585 = vadd.f32 0.0, %v584
        %v586 = vpop.f32.mrf.mxu0
        %v587 = vadd.f32 0.0, %v586
        %588 = vmatmul.bf16.gmra.mxu0 %v408
        %v589 = vpop.f32.mrf.mxu0
        %v590 = vadd.f32 0.0, %v589
        %v591 = vpop.f32.mrf.mxu0
        %v592 = vadd.f32 0.0, %v591
        %593 = vmatmul.bf16.gmra.mxu0 %v409
        %v594 = vpop.f32.mrf.mxu0
        %v595 = vadd.f32 0.0, %v594
        %v596 = vpop.f32.mrf.mxu0
        %v597 = vadd.f32 0.0, %v596
        %598 = vmatmul.bf16.gmra.mxu0 %v410
        %v599 = vpop.f32.mrf.mxu0
        %v600 = vadd.f32 0.0, %v599
        %v601 = vpop.f32.mrf.mxu0
        %v602 = vadd.f32 0.0, %v601
        %603 = vdwg.mxu0
        %604 = vmatpush.bf16.msra.mxu0 %v540
        %605 = vmatpush.bf16.msra.mxu0 %v536
        %606 = vmatpush.bf16.msra.mxu0 %v532
        %607 = vmatpush.bf16.msra.mxu0 %v528
        %608 = vmatpush.bf16.msra.mxu0 %v524
        %609 = vmatpush.bf16.msra.mxu0 %v520
        %610 = vmatpush.bf16.msra.mxu0 %v516
        %611 = vmatpush.bf16.msra.mxu0 %v512
        %612 = vmatmul.bf16.gmra.mxu0 %v407
        %v613 = vpop.f32.mrf.mxu0
        %v614 = vadd.f32 0.0, %v613
        %v615 = vpop.f32.mrf.mxu0
        %v616 = vadd.f32 0.0, %v615
        %617 = vmatmul.bf16.gmra.mxu0 %v408
        %v618 = vpop.f32.mrf.mxu0
        %v619 = vadd.f32 0.0, %v618
        %v620 = vpop.f32.mrf.mxu0
        %v621 = vadd.f32 0.0, %v620
        %622 = vmatmul.bf16.gmra.mxu0 %v409
        %v623 = vpop.f32.mrf.mxu0
        %v624 = vadd.f32 0.0, %v623
        %v625 = vpop.f32.mrf.mxu0
        %v626 = vadd.f32 0.0, %v625
        %627 = vmatmul.bf16.gmra.mxu0 %v410
        %v628 = vpop.f32.mrf.mxu0
        %v629 = vadd.f32 0.0, %v628
        %v630 = vpop.f32.mrf.mxu0
        %v631 = vadd.f32 0.0, %v630
        %632 = vdwg.mxu0
        %633 = vmatpush.bf16.msra.mxu0 %v541
        %634 = vmatpush.bf16.msra.mxu0 %v537
        %635 = vmatpush.bf16.msra.mxu0 %v533
        %636 = vmatpush.bf16.msra.mxu0 %v529
        %637 = vmatpush.bf16.msra.mxu0 %v525
        %638 = vmatpush.bf16.msra.mxu0 %v521
        %639 = vmatpush.bf16.msra.mxu0 %v517
        %640 = vmatpush.bf16.msra.mxu0 %v513
        %641 = vmatmul.bf16.gmra.mxu0 %v407
        %v642 = vpop.f32.mrf.mxu0
        %v643 = vadd.f32 0.0, %v642
        %v644 = vpop.f32.mrf.mxu0
        %v645 = vadd.f32 0.0, %v644
        %646 = vmatmul.bf16.gmra.mxu0 %v408
        %v647 = vpop.f32.mrf.mxu0
        %v648 = vadd.f32 0.0, %v647
        %v649 = vpop.f32.mrf.mxu0
        %v650 = vadd.f32 0.0, %v649
        %651 = vmatmul.bf16.gmra.mxu0 %v409
        %v652 = vpop.f32.mrf.mxu0
        %v653 = vadd.f32 0.0, %v652
        %v654 = vpop.f32.mrf.mxu0
        %v655 = vadd.f32 0.0, %v654
        %656 = vmatmul.bf16.gmra.mxu0 %v410
        %v657 = vpop.f32.mrf.mxu0
        %v658 = vadd.f32 0.0, %v657
        %v659 = vpop.f32.mrf.mxu0
        %v660 = vadd.f32 0.0, %v659
        %661 = vdwg.mxu0
        %662 = vmatpush.bf16.msra.mxu0 %v542
        %663 = vmatpush.bf16.msra.mxu0 %v538
        %664 = vmatpush.bf16.msra.mxu0 %v534
        %665 = vmatpush.bf16.msra.mxu0 %v530
        %666 = vmatpush.bf16.msra.mxu0 %v526
        %667 = vmatpush.bf16.msra.mxu0 %v522
        %668 = vmatpush.bf16.msra.mxu0 %v518
        %669 = vmatpush.bf16.msra.mxu0 %v514
        %670 = vmatmul.bf16.gmra.mxu0 %v407
        %v671 = vpop.f32.mrf.mxu0
        %v672 = vadd.f32 0.0, %v671
        %v673 = vpop.f32.mrf.mxu0
        %v674 = vadd.f32 0.0, %v673
        %675 = vmatmul.bf16.gmra.mxu0 %v408
        %v676 = vpop.f32.mrf.mxu0
        %v677 = vadd.f32 0.0, %v676
        %v678 = vpop.f32.mrf.mxu0
        %v679 = vadd.f32 0.0, %v678
        %680 = vmatmul.bf16.gmra.mxu0 %v409
        %v681 = vpop.f32.mrf.mxu0
        %v682 = vadd.f32 0.0, %v681
        %v683 = vpop.f32.mrf.mxu0
        %v684 = vadd.f32 0.0, %v683
        %685 = vmatmul.bf16.gmra.mxu0 %v410
        %v686 = vpop.f32.mrf.mxu0
        %v687 = vadd.f32 0.0, %v686
        %v688 = vpop.f32.mrf.mxu0
        %v689 = vadd.f32 0.0, %v688
        %690 = vdwg.mxu0
        %v691 = vadd.f32 %v319, %v585
        %v692 = vadd.f32 %v320, %v614
        %v693 = vadd.f32 %v321, %v643
        %v694 = vadd.f32 %v322, %v672
        %v695 = vadd.f32 %v323, %v587
        %v696 = vadd.f32 %v324, %v616
        %v697 = vadd.f32 %v325, %v645
        %v698 = vadd.f32 %v326, %v674
        %v699 = vadd.f32 %v327, %v590
        %v700 = vadd.f32 %v328, %v619
        %v701 = vadd.f32 %v329, %v648
        %v702 = vadd.f32 %v330, %v677
        %v703 = vadd.f32 %v331, %v592
        %v704 = vadd.f32 %v332, %v621
        %v705 = vadd.f32 %v333, %v650
        %v706 = vadd.f32 %v334, %v679
        %v707 = vadd.f32 %v335, %v595
        %v708 = vadd.f32 %v336, %v624
        %v709 = vadd.f32 %v337, %v653
        %v710 = vadd.f32 %v338, %v682
        %v711 = vadd.f32 %v339, %v597
        %v712 = vadd.f32 %v340, %v626
        %v713 = vadd.f32 %v341, %v655
        %v714 = vadd.f32 %v342, %v684
        %v715 = vadd.f32 %v343, %v600
        %v716 = vadd.f32 %v344, %v629
        %v717 = vadd.f32 %v345, %v658
        %v718 = vadd.f32 %v346, %v687
        %v719 = vadd.f32 %v347, %v602
        %v720 = vadd.f32 %v348, %v631
        %v721 = vadd.f32 %v349, %v660
        %v722 = vadd.f32 %v350, %v689
        %723 = vst [vmem:[#allocation2] sm:$0xff] %v691
        %724 = vst [vmem:[#allocation2 + $0x8] sm:$0xff] %v692
        %725 = vst [vmem:[#allocation2 + $0x10] sm:$0xff] %v693
        %726 = vst [vmem:[#allocation2 + $0x18] sm:$0xff] %v694
        %727 = vst [vmem:[#allocation2 + $0x20] sm:$0xff] %v695
        %728 = vst [vmem:[#allocation2 + $0x28] sm:$0xff] %v696
        %729 = vst [vmem:[#allocation2 + $0x30] sm:$0xff] %v697
        %730 = vst [vmem:[#allocation2 + $0x38] sm:$0xff] %v698
        %731 = vst [vmem:[#allocation2 + $0x40] sm:$0xff] %v699
        %732 = vst [vmem:[#allocation2 + $0x48] sm:$0xff] %v700
        %733 = vst [vmem:[#allocation2 + $0x50] sm:$0xff] %v701
        %734 = vst [vmem:[#allocation2 + $0x58] sm:$0xff] %v702
        %735 = vst [vmem:[#allocation2 + $0x60] sm:$0xff] %v703
        %736 = vst [vmem:[#allocation2 + $0x68] sm:$0xff] %v704
        %737 = vst [vmem:[#allocation2 + $0x70] sm:$0xff] %v705
        %738 = vst [vmem:[#allocation2 + $0x78] sm:$0xff] %v706
        %739 = vst [vmem:[#allocation2 + $0x80] sm:$0xff] %v707
        %740 = vst [vmem:[#allocation2 + $0x88] sm:$0xff] %v708
        %741 = vst [vmem:[#allocation2 + $0x90] sm:$0xff] %v709
        %742 = vst [vmem:[#allocation2 + $0x98] sm:$0xff] %v710
        %743 = vst [vmem:[#allocation2 + $0xa0] sm:$0xff] %v711
        %744 = vst [vmem:[#allocation2 + $0xa8] sm:$0xff] %v712
        %745 = vst [vmem:[#allocation2 + $0xb0] sm:$0xff] %v713
        %746 = vst [vmem:[#allocation2 + $0xb8] sm:$0xff] %v714
        %747 = vst [vmem:[#allocation2 + $0xc0] sm:$0xff] %v715
        %748 = vst [vmem:[#allocation2 + $0xc8] sm:$0xff] %v716
        %749 = vst [vmem:[#allocation2 + $0xd0] sm:$0xff] %v717
        %750 = vst [vmem:[#allocation2 + $0xd8] sm:$0xff] %v718
        %751 = vst [vmem:[#allocation2 + $0xe0] sm:$0xff] %v719
        %752 = vst [vmem:[#allocation2 + $0xe8] sm:$0xff] %v720
        %753 = vst [vmem:[#allocation2 + $0xf0] sm:$0xff] %v721
        %754 = vst [vmem:[#allocation2 + $0xf8] sm:$0xff] %v722
        %p755 = scmp.eq.s32.totalorder %s28, 2
        // Predicated region
        $region49: #{tpu_custom_call.1} parent=31 // pred_check
          %p756 = pneg %p755
        $region50: #{tpu_custom_call.1} parent=31 // pred_check_branch
          %758 = sbr.rel (%p756) target = $region52
        $region51: #{tpu_custom_call.1} parent=31 // pred_region
          %v759 = vld [vmem:[#allocation2] sm:$0xff]
          %v760 = vld [vmem:[#allocation2 + $0x8] sm:$0xff]
          %v761 = vld [vmem:[#allocation2 + $0x10] sm:$0xff]
          %v762 = vld [vmem:[#allocation2 + $0x18] sm:$0xff]
          %v763 = vld [vmem:[#allocation2 + $0x20] sm:$0xff]
          %v764 = vld [vmem:[#allocation2 + $0x28] sm:$0xff]
          %v765 = vld [vmem:[#allocation2 + $0x30] sm:$0xff]
          %v766 = vld [vmem:[#allocation2 + $0x38] sm:$0xff]
          %v767 = vld [vmem:[#allocation2 + $0x40] sm:$0xff]
          %v768 = vld [vmem:[#allocation2 + $0x48] sm:$0xff]
          %v769 = vld [vmem:[#allocation2 + $0x50] sm:$0xff]
          %v770 = vld [vmem:[#allocation2 + $0x58] sm:$0xff]
          %v771 = vld [vmem:[#allocation2 + $0x60] sm:$0xff]
          %v772 = vld [vmem:[#allocation2 + $0x68] sm:$0xff]
          %v773 = vld [vmem:[#allocation2 + $0x70] sm:$0xff]
          %v774 = vld [vmem:[#allocation2 + $0x78] sm:$0xff]
          %v775 = vld [vmem:[#allocation2 + $0x80] sm:$0xff]
          %v776 = vld [vmem:[#allocation2 + $0x88] sm:$0xff]
          %v777 = vld [vmem:[#allocation2 + $0x90] sm:$0xff]
          %v778 = vld [vmem:[#allocation2 + $0x98] sm:$0xff]
          %v779 = vld [vmem:[#allocation2 + $0xa0] sm:$0xff]
          %v780 = vld [vmem:[#allocation2 + $0xa8] sm:$0xff]
          %v781 = vld [vmem:[#allocation2 + $0xb0] sm:$0xff]
          %v782 = vld [vmem:[#allocation2 + $0xb8] sm:$0xff]
          %v783 = vld [vmem:[#allocation2 + $0xc0] sm:$0xff]
          %v784 = vld [vmem:[#allocation2 + $0xc8] sm:$0xff]
          %v785 = vld [vmem:[#allocation2 + $0xd0] sm:$0xff]
          %v786 = vld [vmem:[#allocation2 + $0xd8] sm:$0xff]
          %v787 = vld [vmem:[#allocation2 + $0xe0] sm:$0xff]
          %v788 = vld [vmem:[#allocation2 + $0xe8] sm:$0xff]
          %v789 = vld [vmem:[#allocation2 + $0xf0] sm:$0xff]
          %v790 = vld [vmem:[#allocation2 + $0xf8] sm:$0xff]
          %v791 = vld [vmem:[#allocation8] sm:$0xf]
          %v793 = vperm.slane %v791, 0
          %v794 = vperm.slane %v791, 1
          %v795 = vperm.slane %v791, 2
          %v796 = vperm.slane %v791, 3
          %v801 = vadd.f32 %v759, %v793
          %v802 = vadd.f32 %v760, %v794
          %v803 = vadd.f32 %v761, %v795
          %v804 = vadd.f32 %v762, %v796
          %v805 = vadd.f32 %v763, %v793
          %v806 = vadd.f32 %v764, %v794
          %v807 = vadd.f32 %v765, %v795
          %v808 = vadd.f32 %v766, %v796
          %v809 = vadd.f32 %v767, %v793
          %v810 = vadd.f32 %v768, %v794
          %v811 = vadd.f32 %v769, %v795
          %v812 = vadd.f32 %v770, %v796
          %v813 = vadd.f32 %v771, %v793
          %v814 = vadd.f32 %v772, %v794
          %v815 = vadd.f32 %v773, %v795
          %v816 = vadd.f32 %v774, %v796
          %v817 = vadd.f32 %v775, %v793
          %v818 = vadd.f32 %v776, %v794
          %v819 = vadd.f32 %v777, %v795
          %v820 = vadd.f32 %v778, %v796
          %v821 = vadd.f32 %v779, %v793
          %v822 = vadd.f32 %v780, %v794
          %v823 = vadd.f32 %v781, %v795
          %v824 = vadd.f32 %v782, %v796
          %v825 = vadd.f32 %v783, %v793
          %v826 = vadd.f32 %v784, %v794
          %v827 = vadd.f32 %v785, %v795
          %v828 = vadd.f32 %v786, %v796
          %v829 = vadd.f32 %v787, %v793
          %v830 = vadd.f32 %v788, %v794
          %v831 = vadd.f32 %v789, %v795
          %v832 = vadd.f32 %v790, %v796
          %v833 = vpack.c.bf16 %v802, %v801
          %v834 = vpack.c.bf16 %v804, %v803
          %v835 = vpack.c.bf16 %v806, %v805
          %v836 = vpack.c.bf16 %v808, %v807
          %v837 = vpack.c.bf16 %v810, %v809
          %v838 = vpack.c.bf16 %v812, %v811
          %v839 = vpack.c.bf16 %v814, %v813
          %v840 = vpack.c.bf16 %v816, %v815
          %v841 = vpack.c.bf16 %v818, %v817
          %v842 = vpack.c.bf16 %v820, %v819
          %v843 = vpack.c.bf16 %v822, %v821
          %v844 = vpack.c.bf16 %v824, %v823
          %v845 = vpack.c.bf16 %v826, %v825
          %v846 = vpack.c.bf16 %v828, %v827
          %v847 = vpack.c.bf16 %v830, %v829
          %v848 = vpack.c.bf16 %v832, %v831
          %849 = vst [vmem:[#allocation9] sm:$0xff] %v833
          %850 = vst [vmem:[#allocation9 + $0x8] sm:$0xff] %v834
          %851 = vst [vmem:[#allocation9 + $0x10] sm:$0xff] %v835
          %852 = vst [vmem:[#allocation9 + $0x18] sm:$0xff] %v836
          %853 = vst [vmem:[#allocation9 + $0x20] sm:$0xff] %v837
          %854 = vst [vmem:[#allocation9 + $0x28] sm:$0xff] %v838
          %855 = vst [vmem:[#allocation9 + $0x30] sm:$0xff] %v839
          %856 = vst [vmem:[#allocation9 + $0x38] sm:$0xff] %v840
          %857 = vst [vmem:[#allocation9 + $0x40] sm:$0xff] %v841
          %858 = vst [vmem:[#allocation9 + $0x48] sm:$0xff] %v842
          %859 = vst [vmem:[#allocation9 + $0x50] sm:$0xff] %v843
          %860 = vst [vmem:[#allocation9 + $0x58] sm:$0xff] %v844
          %861 = vst [vmem:[#allocation9 + $0x60] sm:$0xff] %v845
          %862 = vst [vmem:[#allocation9 + $0x68] sm:$0xff] %v846
          %863 = vst [vmem:[#allocation9 + $0x70] sm:$0xff] %v847
          %864 = vst [vmem:[#allocation9 + $0x78] sm:$0xff] %v848
        $region52: #{tpu_custom_call.1} parent=31 // pred_fallthru
          _
        // Predicated region
        $region53: #{tpu_custom_call.1} parent=31 // pred_check
          %p865 = pneg %p142
        $region54: #{tpu_custom_call.1} parent=31 // pred_check_branch
          %867 = sbr.rel (%p865) target = $region56
        $region55: #{tpu_custom_call.1} parent=31 // pred_region
          %s868 = smul.u32 8, %s26
          %s869 = smul.u32 4, %s27
          %871 = vsyncadd [#allocation5], 0
          %s872 = smul.addr %s868, 4
          %s873 = sadd.s32 %s869, %s872
          %s874 = smul.addr %s873, 4
          %s875 = scalar_lea.hbm %s3, %s874
          %s876 = sshll.u32 [#allocation9], 4
          %s877 = int_to_ptr.vmem [resolvable:$true] %s876
          %s878 = sshll.u32 %s875, 4
          %s879 = int_to_ptr.hbm [resolvable:$true] %s878
          %884 = dma.vmem_to_hbm [thread:$0]  %s877, 2048, %s879, [#allocation5], 256, 256, 16
        $region56: #{tpu_custom_call.1} parent=31 // pred_fallthru
          _
        // Predicated region
        $region57: #{tpu_custom_call.1} parent=31 // pred_check
          %p885 = pneg %p142
        $region58: #{tpu_custom_call.1} parent=31 // pred_check_branch
          %887 = sbr.rel (%p885) target = $region60
        $region59: #{tpu_custom_call.1} parent=31 // pred_region
          %889 = dma.done [#allocation5], 2048
        $region60: #{tpu_custom_call.1} parent=31 // pred_fallthru
          _
      $region32: #{tpu_custom_call.1} parent=5 // pred_fallthru
        _
      %p890 = scmp.le.s32.totalorder 2, %s16
      // Predicated region
      $region61: #{tpu_custom_call.1} parent=5 // pred_check
        %p891 = pneg %p890
      $region62: #{tpu_custom_call.1} parent=5 // pred_check_branch
        %893 = sbr.rel (%p891) target = $region64
      $region63: #{tpu_custom_call.1} parent=5 // pred_region
        %s894 = ssub.s32 %s16, 2
      $region64: #{tpu_custom_call.1} parent=5 // pred_fallthru
        _
    $region6: #{tpu_custom_call.1} parent=1 // loop_footer
      %s20 = sadd.s32 1, %s16
    $region7: #{tpu_custom_call.1} parent=1 // loop_footer_branch
      %15 = sbr.rel target = $region3
    $region8: #{tpu_custom_call.1} parent=1 // loop_exit
      _
    %895 = vsyncpa [#allocation4], 1
    %s896 = scalar_lea.sflag [#allocation4], 1
    %897 = vsyncpa %s896, 1
    %898 = vsyncpa [#allocation7], 1
    %s899 = scalar_lea.sflag [#allocation7], 1
    %900 = vsyncpa %s899, 1
    %901 = vsyncpa [#allocation5], 1
    %s902 = scalar_lea.sflag [#allocation5], 1
    %903 = vsyncpa %s902, 1

</llo_original>
